<compile_context>
chip_gen: v7x
topology: tpu7x:2x2x1
jax: 0.10.0
libtpu: 0.0.40
codegen_flags: <defaults>
</compile_context>

<pallas_src>
import jax
import jax.numpy as jnp
from jax import lax
from jax.experimental import pallas as pl
from jax.experimental.pallas import tpu as pltpu


def _rw_body(z, mem, msq, zhat_ref, w_ref, logw_ref):
    """z: (C, hw), mem: (C, M), msq: (1, M) = ||m||^2 per slot."""
    z = z.astype(jnp.float32)
    mem = mem.astype(jnp.float32)
    msq = msq.astype(jnp.float32)

    # sim = -||z - m||^2 = 2 z.m - ||m||^2 - ||z||^2 ; the -||z||^2 term is
    # constant along M and cancels in softmax/log_softmax/z_hat -> skipped.
    zm = lax.dot_general(z, mem, (((0,), (0,)), ((), ())),
                         preferred_element_type=jnp.float32)        # (hw, M)
    sim = 2.0 * zm - msq                                            # (hw, M)

    s_max = jnp.max(sim, axis=-1, keepdims=True)                    # (hw, 1)
    shifted = sim - s_max
    e = jnp.exp(shifted)
    denom = jnp.sum(e, axis=-1, keepdims=True)                      # (hw, 1)
    log_denom = jnp.log(denom)
    w = e * jnp.exp(-log_denom)            # EUP path; reuses the log above
    log_w = shifted - log_denom

    # z_hat[c, l] = sum_m mem[c, m] * w[l, m]   -> already (C, hw) lane-dense
    zhat = lax.dot_general(mem, w, (((1,), (1,)), ((), ())),
                           preferred_element_type=jnp.float32)      # (C, hw)

    zhat_ref[...] = zhat.astype(zhat_ref.dtype)
    w_ref[...] = w.astype(w_ref.dtype)
    logw_ref[...] = log_w.astype(logw_ref.dtype)


def _rw_kernel_resident(cls_ref, z_ref, mem_ref, msq_ref,
                        zhat_ref, w_ref, logw_ref):
    # mem_ref: (K, C, M) resident in VMEM; select the class row in-kernel.
    k = cls_ref[pl.program_id(0)]
    _rw_body(z_ref[...], mem_ref[k], msq_ref[k], zhat_ref, w_ref, logw_ref)


def _rw_kernel_per_class(cls_ref, z_ref, mem_ref, msq_ref,
                         zhat_ref, w_ref, logw_ref):
    # mem_ref: (C, M) block for class cls[n], selected by the index_map.
    del cls_ref
    _rw_body(z_ref[...], mem_ref[...], msq_ref[...], zhat_ref, w_ref, logw_ref)


def _pick_hw_tile(hw, max_rows=512):
    if hw <= max_rows:
        return hw
    for t in (512, 384, 256, 128):   # multiples of 128: lane-dense z_hat tiles
        if hw % t == 0:
            return t
    return hw


def memory_cls_euclidean_rw_forward(z, cls, memory, *,
                                    out_dtype=jnp.float32,
                                    resident_limit_bytes=4 * 1024 * 1024):
    """z: (N, C, H, W) f32, cls: (N,) int, memory: (1, C, M, K) f32."""
    N, C, H, W = z.shape
    HW = H * W
    _, C2, M, K = memory.shape
    assert C2 == C

    # NCHW -> (N, C, HW) is a free reshape (no transpose needed by the kernel).
    z_nchw = z.reshape(N, C, HW)
    # memory (1, C, M, K) -> (K, C, M): small one-time parameter relayout.
    mem_kcm = jnp.transpose(memory[0], (2, 0, 1))
    # Precompute ||m||^2 once per (class, slot): (K, 1, M).
    msq_k1m = jnp.sum(jnp.square(mem_kcm), axis=1, keepdims=True)

    hw_tile = _pick_hw_tile(HW)
    grid = (N, HW // hw_tile)
    cls_i32 = cls.astype(jnp.int32)

    z_spec = pl.BlockSpec((pl.Squeezed(), C, hw_tile), lambda n, h, c: (n, 0, h))
    zhat_spec = pl.BlockSpec((pl.Squeezed(), C, hw_tile), lambda n, h, c: (n, 0, h))
    w_spec = pl.BlockSpec((pl.Squeezed(), hw_tile, M), lambda n, h, c: (n, h, 0))

    resident = K * C * M * mem_kcm.dtype.itemsize <= resident_limit_bytes
    if resident:
        kernel = _rw_kernel_resident
        mem_spec = pl.BlockSpec((K, C, M), lambda n, h, c: (0, 0, 0))
        msq_spec = pl.BlockSpec((K, 1, M), lambda n, h, c: (0, 0, 0))
    else:
        kernel = _rw_kernel_per_class
        mem_spec = pl.BlockSpec((pl.Squeezed(), C, M), lambda n, h, c: (c[n], 0, 0))
        msq_spec = pl.BlockSpec((pl.Squeezed(), 1, M), lambda n, h, c: (c[n], 0, 0))

    grid_spec = pltpu.PrefetchScalarGridSpec(
        num_scalar_prefetch=1,
        grid=grid,
        in_specs=[z_spec, mem_spec, msq_spec],
        out_specs=[zhat_spec, w_spec, w_spec],
    )

    zhat_nchw, w, log_w = pl.pallas_call(
        kernel,
        grid_spec=grid_spec,
        out_shape=(
            jax.ShapeDtypeStruct((N, C, HW), out_dtype),
            jax.ShapeDtypeStruct((N, HW, M), out_dtype),
            jax.ShapeDtypeStruct((N, HW, M), out_dtype),
        ),
        compiler_params=pltpu.CompilerParams(
            dimension_semantics=("parallel", "parallel"),
            vmem_limit_bytes=48 * 1024 * 1024,
        ),
    )(cls_i32, z_nchw, mem_kcm, msq_k1m)

    z_hat = zhat_nchw.reshape(N, C, H, W)     # free reshape, no transpose
    w_hat = w                                 # topk == -1 => identity
    return z_hat, w_hat, w, log_w


def _reference_forward(z, cls, memory):
    """Pure-JAX reference mirroring the PyTorch module exactly."""
    N, C, H, W = z.shape
    HW = H * W
    z_r = jnp.transpose(z.reshape(N, C, HW, 1), (0, 2, 1, 3))          # (N,HW,C,1)
    mem_cls = jnp.transpose(memory[:, :, :, cls], (3, 0, 1, 2))        # (N,1,C,M)
    sim = -jnp.sum((z_r - mem_cls) ** 2, axis=2)                       # (N,HW,M)
    w = jax.nn.softmax(sim, axis=2)
    log_w = jax.nn.log_softmax(sim, axis=2)
    mem_b = jnp.transpose(jnp.take(memory[0], cls, axis=2), (2, 0, 1))  # (N,C,M)
    z_hat = jnp.einsum("ncm,nlm->ncl", mem_b, w,
                       precision=lax.Precision.HIGHEST).reshape(N, C, H, W)
    return z_hat, w, w, log_w


if __name__ == "__main__":
    # Small, module-consistent shapes: z_dim(C)=32, mem_dim=128, num_cls=4
    N, C, H, W = 2, 32, 4, 4
    MEM_DIM, NUM_CLS = 128, 4

    key = jax.random.PRNGKey(0)
    k_mem, k_z, k_cls = jax.random.split(key, 3)

    # nn.init.normal_(memory, 0.0, 0.02); R / memory_access_mask unused in fwd.
    memory = 0.02 * jax.random.normal(k_mem, (1, C, MEM_DIM, NUM_CLS), jnp.float32)
    z = jax.random.normal(k_z, (N, C, H, W), jnp.float32)
    cls = jax.random.randint(k_cls, (N,), 0, NUM_CLS, jnp.int32)

    z_hat, w_hat, w, log_w = jax.block_until_ready(
        memory_cls_euclidean_rw_forward(z, cls, memory))

    zr, _, wr, logr = _reference_forward(z, cls, memory)
    assert z_hat.shape == (N, C, H, W)
    assert w.shape == (N, H * W, MEM_DIM) and log_w.shape == (N, H * W, MEM_DIM)
    assert jnp.allclose(z_hat, zr, atol=1e-5, rtol=1e-4)
    assert jnp.allclose(w, wr, atol=1e-5, rtol=1e-4)
    assert jnp.allclose(log_w, logr, atol=5e-5, rtol=1e-5)
    assert jnp.allclose(w_hat, w)

    print("KERNEL_OK")
</pallas_src>

<mosaic_0001>
module attributes {stable_mosaic.version = 11 : i64} {
  func.func @_rw_kernel_resident(%arg0: i32, %arg1: i32, %arg2: memref<2xi32, #tpu.memory_space<smem>>, %arg3: memref<1x32x16xf32, #tpu.memory_space<vmem>>, %arg4: memref<4x32x128xf32, #tpu.memory_space<vmem>>, %arg5: memref<4x1x128xf32, #tpu.memory_space<vmem>>, %arg6: memref<1x32x16xf32, #tpu.memory_space<vmem>>, %arg7: memref<1x16x128xf32, #tpu.memory_space<vmem>>, %arg8: memref<1x16x128xf32, #tpu.memory_space<vmem>>) attributes {dimension_semantics = [#tpu.dimension_semantics<parallel>, #tpu.dimension_semantics<parallel>], iteration_bounds = array<i64: 2, 1>, scalar_prefetch = 1 : i64, scratch_operands = 0 : i64, tpu.core_type = #tpu.core_type<tc>, window_params = [{transform_indices = @transform_0, window_bounds = array<i64: 1, 32, 16>}, {pipeline_mode = #tpu.pipeline_mode<synchronous>, transform_indices = @transform_1, window_bounds = array<i64: 4, 32, 128>}, {pipeline_mode = #tpu.pipeline_mode<synchronous>, transform_indices = @transform_2, window_bounds = array<i64: 4, 1, 128>}, {transform_indices = @transform_3, window_bounds = array<i64: 1, 32, 16>}, {transform_indices = @transform_4, window_bounds = array<i64: 1, 16, 128>}, {transform_indices = @transform_5, window_bounds = array<i64: 1, 16, 128>}]} {
    %0 = arith.index_cast %arg0 : i32 to index
    %1 = memref.load %arg2[%0] : memref<2xi32, #tpu.memory_space<smem>>
    %c0 = arith.constant 0 : index
    %c0_0 = arith.constant 0 : index
    %c0_1 = arith.constant 0 : index
    %2 = vector.load %arg3[%c0, %c0_0, %c0_1] : memref<1x32x16xf32, #tpu.memory_space<vmem>>, vector<1x32x16xf32>
    %3 = vector.shape_cast %2 : vector<1x32x16xf32> to vector<32x16xf32>
    %4 = arith.index_cast %1 : i32 to index
    %c0_2 = arith.constant 0 : index
    %c0_3 = arith.constant 0 : index
    %5 = vector.load %arg4[%4, %c0_2, %c0_3] : memref<4x32x128xf32, #tpu.memory_space<vmem>>, vector<1x32x128xf32>
    %6 = vector.shape_cast %5 : vector<1x32x128xf32> to vector<32x128xf32>
    %7 = arith.index_cast %1 : i32 to index
    %c0_4 = arith.constant 0 : index
    %c0_5 = arith.constant 0 : index
    %8 = vector.load %arg5[%7, %c0_4, %c0_5] : memref<4x1x128xf32, #tpu.memory_space<vmem>>, vector<1x1x128xf32>
    %9 = vector.shape_cast %8 : vector<1x1x128xf32> to vector<1x128xf32>
    %cst = arith.constant dense<0.000000e+00> : vector<16x128xf32>
    %10 = tpu.matmul %3, %6, %cst {dimension_numbers = #tpu.dot_dimension_numbers<[0], [0], [1], [1], [0, 1, 1, 1], [], []>} : vector<32x16xf32>, vector<32x128xf32>, vector<16x128xf32> -> vector<16x128xf32>
    %cst_6 = arith.constant 2.000000e+00 : f32
    %11 = vector.broadcast %cst_6 : f32 to vector<16x128xf32>
    %12 = arith.mulf %11, %10 : vector<16x128xf32>
    %13 = vector.broadcast %9 : vector<1x128xf32> to vector<16x128xf32>
    %14 = arith.subf %12, %13 : vector<16x128xf32>
    %cst_7 = arith.constant dense<0xFF800000> : vector<16xf32>
    %15 = vector.multi_reduction <maximumf>, %14, %cst_7 [1] : vector<16x128xf32> to vector<16xf32>
    %16 = vector.shape_cast %15 : vector<16xf32> to vector<16x1xf32>
    %17 = vector.broadcast %16 : vector<16x1xf32> to vector<16x128xf32>
    %18 = arith.subf %14, %17 : vector<16x128xf32>
    %19 = math.exp %18 : vector<16x128xf32>
    %cst_8 = arith.constant dense<0.000000e+00> : vector<16xf32>
    %20 = vector.multi_reduction <add>, %19, %cst_8 [1] : vector<16x128xf32> to vector<16xf32>
    %21 = vector.shape_cast %20 : vector<16xf32> to vector<16x1xf32>
    %22 = math.log %21 : vector<16x1xf32>
    %cst_9 = arith.constant 0.000000e+00 : f32
    %23 = vector.broadcast %cst_9 : f32 to vector<16x1xf32>
    %24 = arith.subf %23, %22 : vector<16x1xf32>
    %25 = math.exp %24 : vector<16x1xf32>
    %26 = vector.broadcast %25 : vector<16x1xf32> to vector<16x128xf32>
    %27 = arith.mulf %19, %26 : vector<16x128xf32>
    %28 = vector.broadcast %22 : vector<16x1xf32> to vector<16x128xf32>
    %29 = arith.subf %18, %28 : vector<16x128xf32>
    %cst_10 = arith.constant dense<0.000000e+00> : vector<32x16xf32>
    %30 = tpu.matmul %6, %27, %cst_10 {dimension_numbers = #tpu.dot_dimension_numbers<[1], [1], [0], [0], [0, 0, 1, 0], [], []>} : vector<32x128xf32>, vector<16x128xf32>, vector<32x16xf32> -> vector<32x16xf32>
    %c0_11 = arith.constant 0 : index
    %c0_12 = arith.constant 0 : index
    %c0_13 = arith.constant 0 : index
    %31 = vector.load %arg6[%c0_11, %c0_12, %c0_13] : memref<1x32x16xf32, #tpu.memory_space<vmem>>, vector<1x32x16xf32>
    %32 = vector.shape_cast %31 : vector<1x32x16xf32> to vector<32x16xf32>
    %33 = vector.shape_cast %30 : vector<32x16xf32> to vector<1x32x16xf32>
    tpu.vector_store %arg6[%c0_11, %c0_12, %c0_13], %33 {strides = array<i32>} : memref<1x32x16xf32, #tpu.memory_space<vmem>>, vector<1x32x16xf32>,
    %c0_14 = arith.constant 0 : index
    %c0_15 = arith.constant 0 : index
    %c0_16 = arith.constant 0 : index
    %34 = vector.load %arg7[%c0_14, %c0_15, %c0_16] : memref<1x16x128xf32, #tpu.memory_space<vmem>>, vector<1x16x128xf32>
    %35 = vector.shape_cast %34 : vector<1x16x128xf32> to vector<16x128xf32>
    %36 = vector.shape_cast %27 : vector<16x128xf32> to vector<1x16x128xf32>
    tpu.vector_store %arg7[%c0_14, %c0_15, %c0_16], %36 {strides = array<i32>} : memref<1x16x128xf32, #tpu.memory_space<vmem>>, vector<1x16x128xf32>,
    %c0_17 = arith.constant 0 : index
    %c0_18 = arith.constant 0 : index
    %c0_19 = arith.constant 0 : index
    %37 = vector.load %arg8[%c0_17, %c0_18, %c0_19] : memref<1x16x128xf32, #tpu.memory_space<vmem>>, vector<1x16x128xf32>
    %38 = vector.shape_cast %37 : vector<1x16x128xf32> to vector<16x128xf32>
    %39 = vector.shape_cast %29 : vector<16x128xf32> to vector<1x16x128xf32>
    tpu.vector_store %arg8[%c0_17, %c0_18, %c0_19], %39 {strides = array<i32>} : memref<1x16x128xf32, #tpu.memory_space<vmem>>, vector<1x16x128xf32>,
    return
  }
  func.func @transform_0(%arg0: i32, %arg1: i32, %arg2: memref<2xi32, #tpu.memory_space<smem>>) -> (i32, i32, i32) {
    %c0_i32 = arith.constant 0 : i32
    %c0_i32_0 = arith.constant 0 : i32
    return %arg0, %c0_i32, %arg1 : i32, i32, i32
  }
  func.func @transform_1(%arg0: i32, %arg1: i32, %arg2: memref<2xi32, #tpu.memory_space<smem>>) -> (i32, i32, i32) {
    %c0_i32 = arith.constant 0 : i32
    %c0_i32_0 = arith.constant 0 : i32
    %c0_i32_1 = arith.constant 0 : i32
    %c0_i32_2 = arith.constant 0 : i32
    return %c0_i32, %c0_i32_0, %c0_i32_1 : i32, i32, i32
  }
  func.func @transform_2(%arg0: i32, %arg1: i32, %arg2: memref<2xi32, #tpu.memory_space<smem>>) -> (i32, i32, i32) {
    %c0_i32 = arith.constant 0 : i32
    %c0_i32_0 = arith.constant 0 : i32
    %c0_i32_1 = arith.constant 0 : i32
    %c0_i32_2 = arith.constant 0 : i32
    return %c0_i32, %c0_i32_0, %c0_i32_1 : i32, i32, i32
  }
  func.func @transform_3(%arg0: i32, %arg1: i32, %arg2: memref<2xi32, #tpu.memory_space<smem>>) -> (i32, i32, i32) {
    %c0_i32 = arith.constant 0 : i32
    %c0_i32_0 = arith.constant 0 : i32
    return %arg0, %c0_i32, %arg1 : i32, i32, i32
  }
  func.func @transform_4(%arg0: i32, %arg1: i32, %arg2: memref<2xi32, #tpu.memory_space<smem>>) -> (i32, i32, i32) {
    %c0_i32 = arith.constant 0 : i32
    %c0_i32_0 = arith.constant 0 : i32
    return %arg0, %arg1, %c0_i32 : i32, i32, i32
  }
  func.func @transform_5(%arg0: i32, %arg1: i32, %arg2: memref<2xi32, #tpu.memory_space<smem>>) -> (i32, i32, i32) {
    %c0_i32 = arith.constant 0 : i32
    %c0_i32_0 = arith.constant 0 : i32
    return %arg0, %arg1, %c0_i32 : i32, i32, i32
  }
}

</mosaic_0001>

<llo_original>
// kernel: tpu_custom_call.1
$region0: #{tpu_custom_call.1}
  #allocation0 [shape = 'u32[]', space=smem, size = 0x4, offset = 0x4, fixed_abs, tag = 'smem constant byte address 0x4 - core index']
  #allocation1 [shape = 'u32[144,128]{1,0:T(1,128)}', space=vmem, size = 0x12000, scoped, tag = 'internal scratch']
  #allocation2 [shape = 's32[1]{0}', space=sflag, size = 0x4, scoped, tag = 'scoped memory for tpu_custom_call.1']
  #allocation3 [shape = 'u8[512]{0}', space=smem, size = 0x200, scoped, tag = 'prefetched SMEM operand 0']
  %s0 = inlined_call_operand.vmem [shape: s32[2], index: 0, kind: input, shape index: {}]
  %s1 = inlined_call_operand.vmem [shape: f32[2,32,16], index: 1, kind: input, shape index: {}]
  %s2 = inlined_call_operand.hbm [shape: f32[4,32,128], index: 2, kind: input, shape index: {}]
  %s3 = inlined_call_operand.vmem [shape: f32[4,1,128], index: 3, kind: input, shape index: {}]
  %s4 = inlined_call_operand.vmem [shape: f32[2,32,16], index: 4, kind: output, shape index: {0}]
  %s5 = inlined_call_operand.hbm [shape: f32[2,16,128], index: 5, kind: output, shape index: {1}]
  %s6 = inlined_call_operand.hbm [shape: f32[2,16,128], index: 6, kind: output, shape index: {2}]
  %7 = xla_tuple %s4, %s5, %s6
  %s8 = sld [smem:[#allocation0]]
  $region65: #{tpu_custom_call.1} parent=0
    _
  %s10 = ssub.s32 1, %s8
  %s11 = scalar_select 0, %s10, %s8
  %s12 = sshll.u32 %s0, 4
  %s13 = int_to_ptr.vmem [resolvable:$true] %s12
  %15 = dma.vmem_to_smem %s13, 16, [#allocation3], [#allocation2]
  %16 = dma.done [#allocation2], 16
  %17 = sfence
  $region1: #{tpu_custom_call.1} parent=0
    #allocation4 [shape = 'u8[65536]{0}', space=vmem, size = 0x10000, scoped, tag = 'input window, operand 2, single buffered']
    #allocation5 [shape = 's32[2]{0}', space=sflag, size = 0x8, scoped, tag = 'scoped memory for tpu_custom_call.1']
    #allocation6 [shape = 's32[2]{0}', space=sflag, size = 0x8, scoped, tag = 'scoped memory for tpu_custom_call.1']
    #allocation7 [shape = 'u8[16384]{0}', space=vmem, size = 0x4000, scoped, tag = 'output window, operand 1']
    #allocation8 [shape = 'u8[16384]{0}', space=vmem, size = 0x4000, scoped, tag = 'output window, operand 2']
    #allocation9 [shape = 's32[2]{0}', space=sflag, size = 0x8, scoped, tag = 'scoped memory for tpu_custom_call.1']
    %18 = vsyncpa [#allocation5], 0
    %19 = vsyncpa [#allocation6], 0
    %s20 = scalar_lea.sflag [#allocation6], 1
    %21 = vsyncpa %s20, 0
    %22 = vsyncpa [#allocation9], 0
    %s23 = scalar_lea.sflag [#allocation9], 1
    %24 = vsyncpa %s23, 0
    loop: start=0, step=1, limit=4
    $region2: #{tpu_custom_call.1} parent=1 // loop_pre_header
      _
    $region3: #{tpu_custom_call.1} parent=1 // loop_header
      %s26 = sphi 0, %s30
      %p27 = scmp.ge.s32.totalorder %s26, 4
      %s33 = sphi 0, %s45
      %s34 = sphi 0, %s41
      %s35 = sphi 0, %s33
      %s36 = sphi 0, %s34
      %s37 = sphi 0, %s35
      %s38 = sphi 0, %s36
      %s50 = sphi 0, %s52
      %s53 = sphi 0, %s50
      %s54 = sphi 0, %s53
      %s70 = sphi 0, %s54
      %s74 = sphi 0, %s74
      %s76 = sphi 0, %s74
      %s77 = sphi 0, %s76
      %s91 = sphi 0, %s77
      %s95 = sphi 0, %s95
      %s97 = sphi 0, %s95
      %s98 = sphi 0, %s97
      %s112 = sphi 0, %s98
      %s120 = sphi 0, %s122
      %s123 = sphi 0, %s120
      %s124 = sphi 0, %s123
      %s140 = sphi 0, %s124
      %s148 = sphi 0, %s150
      %s151 = sphi 0, %s148
      %s152 = sphi 0, %s151
      %s168 = sphi 0, %s152
      %s176 = sphi 0, %s178
      %s179 = sphi 0, %s176
      %s180 = sphi 0, %s179
      %s196 = sphi 0, %s180
    $region4: #{tpu_custom_call.1} parent=1 // loop_header_branch
      %29 = sbr.rel (%p27) target = $region8
    $region5: #{tpu_custom_call.1} parent=1 // loop_body
      %s31 = ssub.s32 %s26, 1
      %s32 = ssub.s32 %s26, 2
      %s39 = sadd.s32 1, %s34
      %p40 = scmp.ge.s32.totalorder %s39, 1
      %s41 = scalar_select %p40, 0, %s39
      %s42 = sadd.s32 1, %s33
      %s43 = scalar_select %p40, %s42, %s33
      %p44 = scmp.ge.s32.totalorder %s43, 2
      %s45 = scalar_select %p44, 0, %s43
      %s46 = ssub.s32 %s33, %s45
      %s47 = ssub.s32 %s34, %s41
      %s48 = sor.u32 %s46, %s47
      %p49 = scmp.eq.s32.totalorder %s48, 0
      %s51 = sadd.s32 %s50, 1
      %s52 = scalar_select %p49, %s50, %s51
      %p55 = pneg %p49
      %p56 = scmp.eq.s32.totalorder %s26, 1
      %p57 = por %p55, %p56
      %p58 = scmp.ne.s32.totalorder %s50, %s53
      %p59 = scmp.eq.s32.totalorder %s26, 0
      %p60 = por %p58, %p59
      %p61 = scmp.ne.s32.totalorder %s50, %s53
      %p62 = scmp.eq.s32.totalorder %s31, 1
      %p63 = por %p61, %p62
      %p64 = scmp.ne.s32.totalorder %s53, %s54
      %p65 = scmp.eq.s32.totalorder %s31, 0
      %p66 = por %p64, %p65
      %p67 = scmp.ne.s32.totalorder %s53, %s54
      %p68 = scmp.eq.s32.totalorder %s32, 1
      %p69 = por %p67, %p68
      %p71 = scmp.ne.s32.totalorder %s54, %s70
      %p72 = scmp.eq.s32.totalorder %s32, 0
      %p73 = por %p71, %p72
      %s75 = sadd.s32 %s74, 1
      %p78 = scmp.eq.s32.totalorder %s26, 1
      %p79 = scmp.ne.s32.totalorder %s74, %s76
      %p80 = scmp.eq.s32.totalorder %s26, 0
      %p81 = por %p79, %p80
      %p82 = scmp.ne.s32.totalorder %s74, %s76
      %p83 = scmp.eq.s32.totalorder %s31, 1
      %p84 = por %p82, %p83
      %p85 = scmp.ne.s32.totalorder %s76, %s77
      %p86 = scmp.eq.s32.totalorder %s31, 0
      %p87 = por %p85, %p86
      %p88 = scmp.ne.s32.totalorder %s76, %s77
      %p89 = scmp.eq.s32.totalorder %s32, 1
      %p90 = por %p88, %p89
      %p92 = scmp.ne.s32.totalorder %s77, %s91
      %p93 = scmp.eq.s32.totalorder %s32, 0
      %p94 = por %p92, %p93
      %s96 = sadd.s32 %s95, 1
      %p99 = scmp.eq.s32.totalorder %s26, 1
      %p100 = scmp.ne.s32.totalorder %s95, %s97
      %p101 = scmp.eq.s32.totalorder %s26, 0
      %p102 = por %p100, %p101
      %p103 = scmp.ne.s32.totalorder %s95, %s97
      %p104 = scmp.eq.s32.totalorder %s31, 1
      %p105 = por %p103, %p104
      %p106 = scmp.ne.s32.totalorder %s97, %s98
      %p107 = scmp.eq.s32.totalorder %s31, 0
      %p108 = por %p106, %p107
      %p109 = scmp.ne.s32.totalorder %s97, %s98
      %p110 = scmp.eq.s32.totalorder %s32, 1
      %p111 = por %p109, %p110
      %p113 = scmp.ne.s32.totalorder %s98, %s112
      %p114 = scmp.eq.s32.totalorder %s32, 0
      %p115 = por %p113, %p114
      %s116 = ssub.s32 %s33, %s45
      %s117 = ssub.s32 %s34, %s41
      %s118 = sor.u32 %s116, %s117
      %p119 = scmp.eq.s32.totalorder %s118, 0
      %s121 = sadd.s32 %s120, 1
      %s122 = scalar_select %p119, %s120, %s121
      %p125 = pneg %p119
      %p126 = scmp.eq.s32.totalorder %s26, 1
      %p127 = por %p125, %p126
      %p128 = scmp.ne.s32.totalorder %s120, %s123
      %p129 = scmp.eq.s32.totalorder %s26, 0
      %p130 = por %p128, %p129
      %p131 = scmp.ne.s32.totalorder %s120, %s123
      %p132 = scmp.eq.s32.totalorder %s31, 1
      %p133 = por %p131, %p132
      %p134 = scmp.ne.s32.totalorder %s123, %s124
      %p135 = scmp.eq.s32.totalorder %s31, 0
      %p136 = por %p134, %p135
      %p137 = scmp.ne.s32.totalorder %s123, %s124
      %p138 = scmp.eq.s32.totalorder %s32, 1
      %p139 = por %p137, %p138
      %p141 = scmp.ne.s32.totalorder %s124, %s140
      %p142 = scmp.eq.s32.totalorder %s32, 0
      %p143 = por %p141, %p142
      %s144 = ssub.s32 %s33, %s45
      %s145 = ssub.s32 %s34, %s41
      %s146 = sor.u32 %s144, %s145
      %p147 = scmp.eq.s32.totalorder %s146, 0
      %s149 = sadd.s32 %s148, 1
      %s150 = scalar_select %p147, %s148, %s149
      %p153 = pneg %p147
      %p154 = scmp.eq.s32.totalorder %s26, 1
      %p155 = por %p153, %p154
      %p156 = scmp.ne.s32.totalorder %s148, %s151
      %p157 = scmp.eq.s32.totalorder %s26, 0
      %p158 = por %p156, %p157
      %p159 = scmp.ne.s32.totalorder %s148, %s151
      %p160 = scmp.eq.s32.totalorder %s31, 1
      %p161 = por %p159, %p160
      %p162 = scmp.ne.s32.totalorder %s151, %s152
      %p163 = scmp.eq.s32.totalorder %s31, 0
      %p164 = por %p162, %p163
      %p165 = scmp.ne.s32.totalorder %s151, %s152
      %p166 = scmp.eq.s32.totalorder %s32, 1
      %p167 = por %p165, %p166
      %p169 = scmp.ne.s32.totalorder %s152, %s168
      %p170 = scmp.eq.s32.totalorder %s32, 0
      %p171 = por %p169, %p170
      %s172 = ssub.s32 %s33, %s45
      %s173 = ssub.s32 %s34, %s41
      %s174 = sor.u32 %s172, %s173
      %p175 = scmp.eq.s32.totalorder %s174, 0
      %s177 = sadd.s32 %s176, 1
      %s178 = scalar_select %p175, %s176, %s177
      %p181 = pneg %p175
      %p182 = scmp.eq.s32.totalorder %s26, 1
      %p183 = por %p181, %p182
      %p184 = scmp.ne.s32.totalorder %s176, %s179
      %p185 = scmp.eq.s32.totalorder %s26, 0
      %p186 = por %p184, %p185
      %p187 = scmp.ne.s32.totalorder %s176, %s179
      %p188 = scmp.eq.s32.totalorder %s31, 1
      %p189 = por %p187, %p188
      %p190 = scmp.ne.s32.totalorder %s179, %s180
      %p191 = scmp.eq.s32.totalorder %s31, 0
      %p192 = por %p190, %p191
      %p193 = scmp.ne.s32.totalorder %s179, %s180
      %p194 = scmp.eq.s32.totalorder %s32, 1
      %p195 = por %p193, %p194
      %p197 = scmp.ne.s32.totalorder %s180, %s196
      %p198 = scmp.eq.s32.totalorder %s32, 0
      %p199 = por %p197, %p198
      %p200 = scmp.le.s32.totalorder 1, %s26
      %p201 = scmp.lt.s32.totalorder %s26, 3
      %p202 = pnand %p200, %p201
      %p203 = pneg %p202
      // Predicated region
      $region9: #{tpu_custom_call.1} parent=5 // pred_check
        _
      $region10: #{tpu_custom_call.1} parent=5 // pred_check_branch
        %205 = sbr.rel (%p202) target = $region12
      $region11: #{tpu_custom_call.1} parent=5 // pred_region
        %s206 = ssub.s32 %s26, 1
        // Predicated region
        $region13: #{tpu_custom_call.1} parent=11 // pred_check
          %p207 = pneg %p87
        $region14: #{tpu_custom_call.1} parent=11 // pred_check_branch
          %209 = sbr.rel (%p207) target = $region16
        $region15: #{tpu_custom_call.1} parent=11 // pred_region
          %s211 = ssub.s32 2048, 2048
          %212 = vsyncadd [#allocation5], %s211
          %s213 = sshll.u32 [#allocation4], 4
          %s214 = int_to_ptr.vmem [resolvable:$true] %s213
          %219 = dma.hbm_to_vmem [thread:$0]  %s2, 2048, %s214, [#allocation5], 128, 128, 8
        $region16: #{tpu_custom_call.1} parent=11 // pred_fallthru
          _
        // Predicated region
        $region17: #{tpu_custom_call.1} parent=11 // pred_check
          %p220 = pneg %p108
        $region18: #{tpu_custom_call.1} parent=11 // pred_check_branch
          %222 = sbr.rel (%p220) target = $region20
        $region19: #{tpu_custom_call.1} parent=11 // pred_region
          _
        $region20: #{tpu_custom_call.1} parent=11 // pred_fallthru
          _
      $region12: #{tpu_custom_call.1} parent=5 // pred_fallthru
        _
      %p223 = scmp.lt.s32.totalorder %s26, 2
      // Predicated region
      $region21: #{tpu_custom_call.1} parent=5 // pred_check
        %p224 = pneg %p223
      $region22: #{tpu_custom_call.1} parent=5 // pred_check_branch
        %226 = sbr.rel (%p224) target = $region24
      $region23: #{tpu_custom_call.1} parent=5 // pred_region
        // Predicated region
        $region25: #{tpu_custom_call.1} parent=23 // pred_check
          %p227 = pneg %p60
        $region26: #{tpu_custom_call.1} parent=23 // pred_check_branch
          %229 = sbr.rel (%p227) target = $region28
        $region27: #{tpu_custom_call.1} parent=23 // pred_region
          %p230 = scmp.lt.s32.totalorder %s33, 1
          %s231 = scalar_select %p230, %s33, 1
          %p232 = scmp.lt.s32.totalorder %s34, 0
          %s233 = scalar_select %p232, %s34, 0
          %s234 = smul.addr %s231, 4
          %s235 = sadd.s32 %s233, %s234
          %s236 = smul.addr %s235, 8
          %s237 = scalar_lea.vmem %s1, %s236
        $region28: #{tpu_custom_call.1} parent=23 // pred_fallthru
          _
      $region24: #{tpu_custom_call.1} parent=5 // pred_fallthru
        _
      %p238 = scmp.le.s32.totalorder 1, %s26
      %p239 = scmp.lt.s32.totalorder %s26, 3
      %p240 = pnand %p238, %p239
      %p241 = pneg %p240
      // Predicated region
      $region29: #{tpu_custom_call.1} parent=5 // pred_check
        _
      $region30: #{tpu_custom_call.1} parent=5 // pred_check_branch
        %243 = sbr.rel (%p240) target = $region32
      $region31: #{tpu_custom_call.1} parent=5 // pred_region
        %s244 = ssub.s32 %s26, 1
        // Predicated region
        $region33: #{tpu_custom_call.1} parent=31 // pred_check
          %p245 = pneg %p87
        $region34: #{tpu_custom_call.1} parent=31 // pred_check_branch
          %247 = sbr.rel (%p245) target = $region36
        $region35: #{tpu_custom_call.1} parent=31 // pred_region
          %248 = dma.done [#allocation5], 2048
        $region36: #{tpu_custom_call.1} parent=31 // pred_fallthru
          _
        %p249 = scmp.lt.s32.totalorder %s35, 1
        %s250 = scalar_select %p249, %s35, 1
        %p251 = scmp.lt.s32.totalorder %s36, 0
        %s252 = scalar_select %p251, %s36, 0
        %s253 = smul.addr %s250, 4
        %s254 = sadd.s32 %s252, %s253
        %s255 = smul.addr %s254, 8
        %s256 = scalar_lea.vmem %s1, %s255
        %p257 = pneg %p66
        %p258 = pneg %p63
        %p259 = pneg %p87
        %p260 = pneg %p84
        %p261 = pneg %p108
        %p262 = pneg %p105
        %p263 = pneg %p136
        %p264 = pneg %p133
        %p265 = scmp.lt.s32.totalorder %s35, 1
        %s266 = scalar_select %p265, %s35, 1
        %p267 = scmp.lt.s32.totalorder %s36, 0
        %s268 = scalar_select %p267, %s36, 0
        %s269 = smul.addr %s266, 4
        %s270 = sadd.s32 %s268, %s269
        %s271 = smul.addr %s270, 8
        %s272 = scalar_lea.vmem %s4, %s271
        %p273 = pneg %p164
        %p274 = pneg %p161
        %s275 = sand.u32 %s151, 1
        %s276 = scalar_lea.sflag [#allocation6], %s275
        %s277 = sand.u32 %s151, 1
        %s278 = smul.addr %s277, 16
        %s279 = scalar_lea.vmem [#allocation7], %s278
        %p280 = pneg %p192
        %p281 = pneg %p189
        %s282 = sand.u32 %s179, 1
        %s283 = scalar_lea.sflag [#allocation9], %s282
        %s284 = sand.u32 %s179, 1
        %s285 = smul.addr %s284, 16
        %s286 = scalar_lea.vmem [#allocation8], %s285
        %p287 = scmp.lt.s32.totalorder %s35, 1
        %s288 = scalar_select %p287, %s35, 1
        %p289 = scmp.lt.s32.totalorder %s36, 0
        %s290 = scalar_select %p289, %s36, 0
        %s291 = smul.addr %s288, 4
        %s292 = sadd.s32 %s290, %s291
        %s293 = smul.addr %s292, 8
        %s294 = scalar_lea.vmem %s1, %s293
        %p295 = scmp.lt.s32.totalorder %s35, 1
        %s296 = scalar_select %p295, %s35, 1
        %p297 = scmp.lt.s32.totalorder %s36, 0
        %s298 = scalar_select %p297, %s36, 0
        %s299 = smul.addr %s296, 4
        %s300 = sadd.s32 %s298, %s299
        %s301 = smul.addr %s300, 8
        %s302 = scalar_lea.vmem %s4, %s301
        %s303 = smul.u32 2, %s36
        %s304 = smul.u32 2, %s36
        %s305 = sld [smem:[#allocation3 + %s35]]
        %v306 = vld [vmem:[%s294] sm:$0xff]
        %v307 = vld [vmem:[%s294 + $0x8] sm:$0xff]
        %v308 = vld [vmem:[%s294 + $0x10] sm:$0xff]
        %v309 = vld [vmem:[%s294 + $0x18] sm:$0xff]
        %s310 = smul.u32 %s305, 32
        %s311 = scalar_lea.vmem [#allocation4], %s310
        %v312 = vld [vmem:[%s311] sm:$0xff]
        %v313 = vld [vmem:[%s311 + $0x8] sm:$0xff]
        %v314 = vld [vmem:[%s311 + $0x10] sm:$0xff]
        %v315 = vld [vmem:[%s311 + $0x18] sm:$0xff]
        %s316 = scalar_lea.vmem %s3, %s305
        %v317 = vld [vmem:[%s316] sm:$0x1]
        %318 = vxpose.xlu0.b32.start [1/16] %v306, 128
        %319 = vxpose.xlu0.b32.cont [2/16] %v307, 128
        %320 = vxpose.xlu0.b32.cont [3/16] %v308, 128
        %321 = vxpose.xlu0.b32.cont [4/16] %v309, 128
        %322 = vxpose.xlu0.b32.cont [5/16] 0.0, 128
        %323 = vxpose.xlu0.b32.cont [6/16] 0.0, 128
        %324 = vxpose.xlu0.b32.cont [7/16] 0.0, 128
        %325 = vxpose.xlu0.b32.cont [8/16] 0.0, 128
        %326 = vxpose.xlu0.b32.cont [9/16] 0.0, 128
        %327 = vxpose.xlu0.b32.cont [10/16] 0.0, 128
        %328 = vxpose.xlu0.b32.cont [11/16] 0.0, 128
        %329 = vxpose.xlu0.b32.cont [12/16] 0.0, 128
        %330 = vxpose.xlu0.b32.cont [13/16] 0.0, 128
        %331 = vxpose.xlu0.b32.cont [14/16] 0.0, 128
        %332 = vxpose.xlu0.b32.cont [15/16] 0.0, 128
        %333 = vxpose.xlu0.b32.end [16/16] 0.0, 128
        %v334 = vpop.trf.xlu0
        %v335 = vpop.trf.xlu0
        %v336 = vpop.trf.xlu0
        %v337 = vpop.trf.xlu0
        %v338 = vpop.trf.xlu0
        %v339 = vpop.trf.xlu0
        %v340 = vpop.trf.xlu0
        %v341 = vpop.trf.xlu0
        %v342 = vpop.trf.xlu0
        %v343 = vpop.trf.xlu0
        %v344 = vpop.trf.xlu0
        %v345 = vpop.trf.xlu0
        %v346 = vpop.trf.xlu0
        %v347 = vpop.trf.xlu0
        %v348 = vpop.trf.xlu0
        %v349 = vpop.trf.xlu0
        %vm350 = vcmask 261120
        %v352 = vsel %vm350, %v334, 0
        %v355 = vsel %vm350, %v335, 0
        %357 = vmatprep.subr.mxu0 0.0
        %358 = vmatpush1.msra.mxu0 %v312
        %359 = vmatprep.subr.mxu0 0.0
        %360 = vmatpush1.msra.mxu0 %v313
        %361 = vmatprep.subr.mxu0 0.0
        %362 = vmatpush1.msra.mxu0 %v314
        %363 = vmatprep.subr.mxu0 0.0
        %364 = vmatpush1.msra.mxu0 %v315
        %365 = vmatprep.subr.mxu0 0.0
        %366 = vmatpush1.msra.mxu0 0.0
        %367 = vmatprep.subr.mxu0 0.0
        %368 = vmatpush1.msra.mxu0 0.0
        %369 = vmatprep.subr.mxu0 0.0
        %370 = vmatpush1.msra.mxu0 0.0
        %371 = vmatprep.subr.mxu0 0.0
        %372 = vmatpush1.msra.mxu0 0.0
        %373 = vmatprep.subr.mxu0 0.0
        %374 = vmatpush1.msra.mxu0 0.0
        %375 = vmatprep.subr.mxu0 0.0
        %376 = vmatpush1.msra.mxu0 0.0
        %377 = vmatprep.subr.mxu0 0.0
        %378 = vmatpush1.msra.mxu0 0.0
        %379 = vmatprep.subr.mxu0 0.0
        %380 = vmatpush1.msra.mxu0 0.0
        %381 = vmatprep.subr.mxu0 0.0
        %382 = vmatpush1.msra.mxu0 0.0
        %383 = vmatprep.subr.mxu0 0.0
        %384 = vmatpush1.msra.mxu0 0.0
        %385 = vmatprep.subr.mxu0 0.0
        %386 = vmatpush1.msra.mxu0 0.0
        %387 = vmatprep.subr.mxu0 0.0
        %388 = vmatpush1.msra.mxu0 0.0
        %389 = vmatprep.subr.mxu0 0.0
        %390 = vmatpush1.msra.mxu0 0.0
        %391 = vmatprep.subr.mxu0 0.0
        %392 = vmatpush1.msra.mxu0 0.0
        %393 = vmatprep.subr.mxu0 0.0
        %394 = vmatpush1.msra.mxu0 0.0
        %395 = vmatprep.subr.mxu0 0.0
        %396 = vmatpush1.msra.mxu0 0.0
        %397 = vmatprep.subr.mxu0 0.0
        %398 = vmatpush1.msra.mxu0 0.0
        %399 = vmatprep.subr.mxu0 0.0
        %400 = vmatpush1.msra.mxu0 0.0
        %401 = vmatprep.subr.mxu0 0.0
        %402 = vmatpush1.msra.mxu0 0.0
        %403 = vmatprep.subr.mxu0 0.0
        %404 = vmatpush1.msra.mxu0 0.0
        %405 = vmatprep.subr.mxu0 0.0
        %406 = vmatpush1.msra.mxu0 0.0
        %407 = vmatprep.subr.mxu0 0.0
        %408 = vmatpush1.msra.mxu0 0.0
        %409 = vmatprep.subr.mxu0 0.0
        %410 = vmatpush1.msra.mxu0 0.0
        %411 = vmatprep.subr.mxu0 0.0
        %412 = vmatpush1.msra.mxu0 0.0
        %413 = vmatprep.subr.mxu0 0.0
        %414 = vmatpush1.msra.mxu0 0.0
        %415 = vmatprep.subr.mxu0 0.0
        %416 = vmatpush1.msra.mxu0 0.0
        %417 = vmatprep.subr.mxu0 0.0
        %418 = vmatpush1.msra.mxu0 0.0
        %419 = vmatprep.subr.mxu0 0.0
        %420 = vmatpush1.msra.mxu0 0.0
        %421 = vmatprep.mubr.f32.mxu0 0.0
        %422 = vmatmul.mubr.f32.gmra.mrb[0].mxu0 %v352
        %v423 = vpop.f32.mrb[0].mxu0
        %v424 = vadd.f32 0.0, %v423
        %v425 = vpop.f32.mrb[0].mxu0
        %426 = vmatprep.mubr.f32.mxu0 0.0
        %427 = vmatmul.mubr.f32.gmra.mrb[0].mxu0 %v355
        %v428 = vpop.f32.mrb[0].mxu0
        %v429 = vadd.f32 0.0, %v428
        %v430 = vpop.f32.mrb[0].mxu0
        %431 = vdwg.mxu0
        %v432 = vmul.f32 %v424, 2.0
        %v433 = vmul.f32 %v429, 2.0
        %v435 = vlaneseq
        %v436 = vshrl.u32 %v435, 7
        %v437 = vsub.s32 0, %v436
        %v438 = vrot.slane %v317, %v437
        %v440 = vsub.f32 %v432, %v438
        %v441 = vsub.f32 %v433, %v438
        %442 = vmax.xlane.f32.xlu0 %v440
        %v443 = vpop.xlane.xlu0 %442
        %444 = vmax.xlane.f32.xlu0 %v441
        %v445 = vpop.xlane.xlu0 %444
        %v446 = vsub.f32 %v440, %v443
        %v447 = vsub.f32 %v441, %v445
        %v448 = vmul.f32 %v446, 1.442695
        %v449 = vpow.pop %v448
        %v450 = vmul.f32 %v447, 1.442695
        %v451 = vpow.pop %v450
        %452 = vadd.xlane.f32.xlu0 %v449
        %v453 = vpop.xlane.xlu0 %452
        %454 = vadd.xlane.f32.xlu0 %v451
        %v455 = vpop.xlane.xlu0 %454
        %v456 = vlog2.pop %v453
        %v457 = vmul.f32 %v456, 0.6931472
        %v458 = vlog2.pop %v455
        %v459 = vmul.f32 %v458, 0.6931472
        %v460 = vsub.f32 0.0, %v457
        %v461 = vsub.f32 0.0, %v459
        %v462 = vmul.f32 %v460, 1.442695
        %v463 = vpow.pop %v462
        %v464 = vmul.f32 %v461, 1.442695
        %v465 = vpow.pop %v464
        %v466 = vmul.f32 %v449, %v463
        %v467 = vmul.f32 %v451, %v465
        %v468 = vsub.f32 %v446, %v457
        %v469 = vsub.f32 %v447, %v459
        %470 = vmatprep.subr.mxu0 0.0
        %471 = vmatpush1.xpose.msra.mxu0 %v466
        %472 = vmatprep.subr.mxu0 0.0
        %473 = vmatpush1.xpose.msra.mxu0 %v467
        %474 = vmatprep.subr.mxu0 0.0
        %475 = vmatpush1.xpose.msra.mxu0 0.0
        %476 = vmatprep.subr.mxu0 0.0
        %477 = vmatpush1.xpose.msra.mxu0 0.0
        %478 = vmatprep.subr.mxu0 0.0
        %479 = vmatpush1.xpose.msra.mxu0 0.0
        %480 = vmatprep.subr.mxu0 0.0
        %481 = vmatpush1.xpose.msra.mxu0 0.0
        %482 = vmatprep.subr.mxu0 0.0
        %483 = vmatpush1.xpose.msra.mxu0 0.0
        %484 = vmatprep.subr.mxu0 0.0
        %485 = vmatpush1.xpose.msra.mxu0 0.0
        %486 = vmatprep.subr.mxu0 0.0
        %487 = vmatpush1.xpose.msra.mxu0 0.0
        %488 = vmatprep.subr.mxu0 0.0
        %489 = vmatpush1.xpose.msra.mxu0 0.0
        %490 = vmatprep.subr.mxu0 0.0
        %491 = vmatpush1.xpose.msra.mxu0 0.0
        %492 = vmatprep.subr.mxu0 0.0
        %493 = vmatpush1.xpose.msra.mxu0 0.0
        %494 = vmatprep.subr.mxu0 0.0
        %495 = vmatpush1.xpose.msra.mxu0 0.0
        %496 = vmatprep.subr.mxu0 0.0
        %497 = vmatpush1.xpose.msra.mxu0 0.0
        %498 = vmatprep.subr.mxu0 0.0
        %499 = vmatpush1.xpose.msra.mxu0 0.0
        %500 = vmatprep.subr.mxu0 0.0
        %501 = vmatpush1.xpose.msra.mxu0 0.0
        %502 = vmatprep.subr.mxu0 0.0
        %503 = vmatpush1.xpose.msra.mxu0 0.0
        %504 = vmatprep.subr.mxu0 0.0
        %505 = vmatpush1.xpose.msra.mxu0 0.0
        %506 = vmatprep.subr.mxu0 0.0
        %507 = vmatpush1.xpose.msra.mxu0 0.0
        %508 = vmatprep.subr.mxu0 0.0
        %509 = vmatpush1.xpose.msra.mxu0 0.0
        %510 = vmatprep.subr.mxu0 0.0
        %511 = vmatpush1.xpose.msra.mxu0 0.0
        %512 = vmatprep.subr.mxu0 0.0
        %513 = vmatpush1.xpose.msra.mxu0 0.0
        %514 = vmatprep.subr.mxu0 0.0
        %515 = vmatpush1.xpose.msra.mxu0 0.0
        %516 = vmatprep.subr.mxu0 0.0
        %517 = vmatpush1.xpose.msra.mxu0 0.0
        %518 = vmatprep.subr.mxu0 0.0
        %519 = vmatpush1.xpose.msra.mxu0 0.0
        %520 = vmatprep.subr.mxu0 0.0
        %521 = vmatpush1.xpose.msra.mxu0 0.0
        %522 = vmatprep.subr.mxu0 0.0
        %523 = vmatpush1.xpose.msra.mxu0 0.0
        %524 = vmatprep.subr.mxu0 0.0
        %525 = vmatpush1.xpose.msra.mxu0 0.0
        %526 = vmatprep.subr.mxu0 0.0
        %527 = vmatpush1.xpose.msra.mxu0 0.0
        %528 = vmatprep.subr.mxu0 0.0
        %529 = vmatpush1.xpose.msra.mxu0 0.0
        %530 = vmatprep.subr.mxu0 0.0
        %531 = vmatpush1.xpose.msra.mxu0 0.0
        %532 = vmatprep.subr.mxu0 0.0
        %533 = vmatpush1.xpose.msra.mxu0 0.0
        %534 = vmatprep.mubr.f32.mxu0 0.0
        %535 = vmatmul.mubr.f32.gmra.mrb[0].mxu0 %v312
        %v536 = vpop.f32.mrb[0].mxu0
        %v537 = vadd.f32 0.0, %v536
        %v538 = vpop.f32.mrb[0].mxu0
        %539 = vmatprep.mubr.f32.mxu0 0.0
        %540 = vmatmul.mubr.f32.gmra.mrb[0].mxu0 %v313
        %v541 = vpop.f32.mrb[0].mxu0
        %v542 = vadd.f32 0.0, %v541
        %v543 = vpop.f32.mrb[0].mxu0
        %544 = vmatprep.mubr.f32.mxu0 0.0
        %545 = vmatmul.mubr.f32.gmra.mrb[0].mxu0 %v314
        %v546 = vpop.f32.mrb[0].mxu0
        %v547 = vadd.f32 0.0, %v546
        %v548 = vpop.f32.mrb[0].mxu0
        %549 = vmatprep.mubr.f32.mxu0 0.0
        %550 = vmatmul.mubr.f32.gmra.mrb[0].mxu0 %v315
        %v551 = vpop.f32.mrb[0].mxu0
        %v552 = vadd.f32 0.0, %v551
        %v553 = vpop.f32.mrb[0].mxu0
        %554 = vdwg.mxu0
        %vm555 = vcmask 130048
        %556 = vst.msk [vmem:[%s302] sm:$0xff] %vm555, %v537
        %557 = vst.msk [vmem:[%s302 + $0x8] sm:$0xff] %vm555, %v542
        %558 = vst.msk [vmem:[%s302 + $0x10] sm:$0xff] %vm555, %v547
        %559 = vst.msk [vmem:[%s302 + $0x18] sm:$0xff] %vm555, %v552
        %560 = vst [vmem:[%s279] sm:$0xff] %v466
        %561 = vst [vmem:[%s279 + $0x8] sm:$0xff] %v467
        %562 = vst [vmem:[%s286] sm:$0xff] %v468
        %563 = vst [vmem:[%s286 + $0x8] sm:$0xff] %v469
        %p564 = scmp.lt.s32.totalorder %s35, 1
        %s565 = scalar_select %p564, %s35, 1
        %p566 = scmp.lt.s32.totalorder %s36, 0
        %s567 = scalar_select %p566, %s36, 0
        %s568 = smul.addr %s565, 4
        %s569 = sadd.s32 %s567, %s568
        %s570 = smul.addr %s569, 8
        %s571 = scalar_lea.vmem %s4, %s570
        %s572 = sand.u32 %s151, 1
        %s573 = scalar_lea.sflag [#allocation6], %s572
        %s574 = sand.u32 %s151, 1
        %s575 = smul.addr %s574, 16
        %s576 = scalar_lea.vmem [#allocation7], %s575
        %s577 = sand.u32 %s179, 1
        %s578 = scalar_lea.sflag [#allocation9], %s577
        %s579 = sand.u32 %s179, 1
        %s580 = smul.addr %s579, 16
        %s581 = scalar_lea.vmem [#allocation8], %s580
        // Predicated region
        $region37: #{tpu_custom_call.1} parent=31 // pred_check
          %p582 = pneg %p133
        $region38: #{tpu_custom_call.1} parent=31 // pred_check_branch
          %584 = sbr.rel (%p582) target = $region40
        $region39: #{tpu_custom_call.1} parent=31 // pred_region
          _
        $region40: #{tpu_custom_call.1} parent=31 // pred_fallthru
          _
        // Predicated region
        $region41: #{tpu_custom_call.1} parent=31 // pred_check
          %p585 = pneg %p161
        $region42: #{tpu_custom_call.1} parent=31 // pred_check_branch
          %587 = sbr.rel (%p585) target = $region44
        $region43: #{tpu_custom_call.1} parent=31 // pred_region
          %s588 = smul.u32 2, %s36
          %s590 = ssub.s32 256, 256
          %591 = vsyncadd %s573, %s590
          %s592 = smul.addr %s35, 2
          %s593 = sadd.s32 %s588, %s592
          %s594 = smul.addr %s593, 128
          %s595 = scalar_lea.hbm %s5, %s594
          %s596 = sshll.u32 %s576, 4
          %s597 = int_to_ptr.vmem [resolvable:$true] %s596
          %602 = dma.vmem_to_hbm [thread:$0]  %s597, 256, %s595, %s573, 128, 128, 8
        $region44: #{tpu_custom_call.1} parent=31 // pred_fallthru
          _
        // Predicated region
        $region45: #{tpu_custom_call.1} parent=31 // pred_check
          %p603 = pneg %p189
        $region46: #{tpu_custom_call.1} parent=31 // pred_check_branch
          %605 = sbr.rel (%p603) target = $region48
        $region47: #{tpu_custom_call.1} parent=31 // pred_region
          %s606 = smul.u32 2, %s36
          %s608 = ssub.s32 256, 256
          %609 = vsyncadd %s578, %s608
          %s610 = smul.addr %s35, 2
          %s611 = sadd.s32 %s606, %s610
          %s612 = smul.addr %s611, 128
          %s613 = scalar_lea.hbm %s6, %s612
          %s614 = sshll.u32 %s581, 4
          %s615 = int_to_ptr.vmem [resolvable:$true] %s614
          %620 = dma.vmem_to_hbm [thread:$0]  %s615, 256, %s613, %s578, 128, 128, 8
        $region48: #{tpu_custom_call.1} parent=31 // pred_fallthru
          _
      $region32: #{tpu_custom_call.1} parent=5 // pred_fallthru
        _
      %p621 = scmp.le.s32.totalorder 2, %s26
      // Predicated region
      $region49: #{tpu_custom_call.1} parent=5 // pred_check
        %p622 = pneg %p621
      $region50: #{tpu_custom_call.1} parent=5 // pred_check_branch
        %624 = sbr.rel (%p622) target = $region52
      $region51: #{tpu_custom_call.1} parent=5 // pred_region
        %s625 = ssub.s32 %s26, 2
        // Predicated region
        $region53: #{tpu_custom_call.1} parent=51 // pred_check
          %p626 = pneg %p139
        $region54: #{tpu_custom_call.1} parent=51 // pred_check_branch
          %628 = sbr.rel (%p626) target = $region56
        $region55: #{tpu_custom_call.1} parent=51 // pred_region
          %p629 = scmp.lt.s32.totalorder %s37, 1
          %s630 = scalar_select %p629, %s37, 1
          %p631 = scmp.lt.s32.totalorder %s38, 0
          %s632 = scalar_select %p631, %s38, 0
          %s633 = smul.addr %s630, 4
          %s634 = sadd.s32 %s632, %s633
          %s635 = smul.addr %s634, 8
          %s636 = scalar_lea.vmem %s4, %s635
        $region56: #{tpu_custom_call.1} parent=51 // pred_fallthru
          _
        // Predicated region
        $region57: #{tpu_custom_call.1} parent=51 // pred_check
          %p637 = pneg %p167
        $region58: #{tpu_custom_call.1} parent=51 // pred_check_branch
          %639 = sbr.rel (%p637) target = $region60
        $region59: #{tpu_custom_call.1} parent=51 // pred_region
          %s640 = sand.u32 %s152, 1
          %s641 = scalar_lea.sflag [#allocation6], %s640
          %s642 = sand.u32 %s152, 1
          %s643 = smul.addr %s642, 16
          %s644 = scalar_lea.vmem [#allocation7], %s643
          %645 = dma.done %s641, 256
        $region60: #{tpu_custom_call.1} parent=51 // pred_fallthru
          _
        // Predicated region
        $region61: #{tpu_custom_call.1} parent=51 // pred_check
          %p646 = pneg %p195
        $region62: #{tpu_custom_call.1} parent=51 // pred_check_branch
          %648 = sbr.rel (%p646) target = $region64
        $region63: #{tpu_custom_call.1} parent=51 // pred_region
          %s649 = sand.u32 %s180, 1
          %s650 = scalar_lea.sflag [#allocation9], %s649
          %s651 = sand.u32 %s180, 1
          %s652 = smul.addr %s651, 16
          %s653 = scalar_lea.vmem [#allocation8], %s652
          %654 = dma.done %s650, 256
        $region64: #{tpu_custom_call.1} parent=51 // pred_fallthru
          _
      $region52: #{tpu_custom_call.1} parent=5 // pred_fallthru
        _
    $region6: #{tpu_custom_call.1} parent=1 // loop_footer
      %s30 = sadd.s32 1, %s26
    $region7: #{tpu_custom_call.1} parent=1 // loop_footer_branch
      %25 = sbr.rel target = $region3
    $region8: #{tpu_custom_call.1} parent=1 // loop_exit
      _
    %655 = vsyncpa [#allocation5], 1
    %s656 = scalar_lea.sflag [#allocation5], 1
    %657 = vsyncpa %s656, 1
    %658 = vsyncpa [#allocation6], 1
    %s659 = scalar_lea.sflag [#allocation6], 1
    %660 = vsyncpa %s659, 1
    %661 = vsyncpa [#allocation9], 1
    %s662 = scalar_lea.sflag [#allocation9], 1
    %663 = vsyncpa %s662, 1

</llo_original>
